<compile_context>
chip_gen: v5e
topology: v5e:2x2
jax: 0.10.0
libtpu: 0.0.40
codegen_flags: <defaults>
</compile_context>

<pallas_src>
from functools import partial

import jax
import jax.numpy as jnp
from jax import lax
from jax.experimental import pallas as pl
from jax.experimental.pallas import tpu as pltpu

# Fixed blur taps: [[1,2,1],[2,4,2],[1,2,1]] / 16  (registered buffer in the torch module)
_BLUR_TAPS = [[1.0, 2.0, 1.0],
              [2.0, 4.0, 2.0],
              [1.0, 2.0, 1.0]]
_BLUR_SUM = 16.0


def _blur_kernel(x_ref, o_ref, *, H, W):
    # x_ref / o_ref: (BC, H*W) -- BC (n, c)-slabs, spatial dims flattened onto lanes.
    HW = H * W
    x = x_ref[...].astype(jnp.float32)                     # (BC, HW)

    # Boundary masks: built once per grid step at (1, HW), broadcast on use.
    col = lax.broadcasted_iota(jnp.int32, (1, HW), 1)      # flattened index h*W + w
    w_in_row = col % W
    m_up    = (col >= W).astype(jnp.float32)               # row h-1 exists
    m_down  = (col < HW - W).astype(jnp.float32)           # row h+1 exists
    m_left  = (w_in_row > 0).astype(jnp.float32)           # col w-1 exists
    m_right = (w_in_row < W - 1).astype(jnp.float32)       # col w+1 exists

    # Vertical pass: v[h, w] = x[h-1, w] + 2*x[h, w] + x[h+1, w]   (zero outside).
    # A +/-1 shift in h is a +/-W rotation of the flattened lane axis; the
    # wrapped-around elements are exactly the zero-padding rows -> masked to 0.
    up   = pltpu.roll(x, shift=W % HW, axis=1) * m_up
    down = pltpu.roll(x, shift=(HW - W) % HW, axis=1) * m_down
    v = up + (x + x) + down

    # Horizontal pass: out = (v[w-1] + 2*v[w] + v[w+1]) / 16        (zero outside).
    left  = pltpu.roll(v, shift=1 % HW, axis=1) * m_left
    right = pltpu.roll(v, shift=(HW - 1) % HW, axis=1) * m_right
    out = (left + (v + v) + right) * jnp.float32(1.0 / _BLUR_SUM)

    o_ref[...] = out.astype(o_ref.dtype)


def _pick_block_slabs(NC, HW):
    """(n, c)-slabs per grid step: ~1 MiB of f32 input per block, sublane-aligned."""
    if NC <= 8:
        return NC                                    # block dim == full array dim (allowed)
    target_elems = 256 * 1024                        # ~1 MiB f32: tile-size-sweep plateau
    bc = (max(target_elems // max(HW, 1), 8) // 8) * 8
    bc = max(8, min(bc, NC))
    # If one block would swallow everything but there is enough work, split so
    # the "parallel" grid axis can shard across both TensorCores (v7x megacore).
    if bc >= NC and NC >= 16:
        bc = max(8, ((NC // 2 + 7) // 8) * 8)
    return int(bc)


def blur(x, *, block_slabs=None):
    """Depthwise 3x3 blur == F.conv2d(x, w.repeat(C,1,1,1), padding=1, groups=C)."""
    N, C, H, W = x.shape
    NC, HW = N * C, H * W
    xr = x.reshape(NC, HW)                           # free (metadata-only) reshape

    if block_slabs is None:
        block_slabs = _pick_block_slabs(NC, HW)
    grid = (pl.cdiv(NC, block_slabs),)

    out = pl.pallas_call(
        partial(_blur_kernel, H=H, W=W),
        out_shape=jax.ShapeDtypeStruct((NC, HW), x.dtype),
        grid=grid,
        in_specs=[pl.BlockSpec((block_slabs, HW), lambda i: (i, 0))],
        out_specs=pl.BlockSpec((block_slabs, HW), lambda i: (i, 0)),
        compiler_params=pltpu.CompilerParams(
            dimension_semantics=("parallel",),
            vmem_limit_bytes=48 * 1024 * 1024,       # headroom even under v7x 64 MiB VMEM
        ),
        cost_estimate=pl.CostEstimate(
            flops=11 * NC * HW,
            transcendentals=0,
            bytes_accessed=2 * NC * HW * x.dtype.itemsize,
        ),
    )(xr)
    return out.reshape(N, C, H, W)


def _reference_blur(x):
    """Independent reference via lax grouped convolution (mirrors F.conv2d)."""
    N, C, H, W = x.shape
    w = jnp.asarray(_BLUR_TAPS, dtype=jnp.float32) / _BLUR_SUM             # (3, 3)
    w = jnp.broadcast_to(w[None, None], (C, 1, 3, 3))                      # weight.repeat
    return lax.conv_general_dilated(
        x.astype(jnp.float32), w,
        window_strides=(1, 1), padding=((1, 1), (1, 1)),
        dimension_numbers=("NCHW", "OIHW", "NCHW"),
        feature_group_count=C,
    ).astype(x.dtype)


if __name__ == "__main__":
    key = jax.random.PRNGKey(0)
    N, C, H, W = 2, 4, 16, 16
    x = jax.random.normal(key, (N, C, H, W), dtype=jnp.float32)

    y = jax.jit(blur)(x)
    jax.block_until_ready(y)

    y_ref = _reference_blur(x)
    assert y.shape == (N, C, H, W)
    assert jnp.allclose(y, y_ref, atol=1e-5, rtol=1e-5), "mismatch vs conv reference"

    print("KERNEL_OK")
</pallas_src>

<mosaic_0001>
module attributes {stable_mosaic.version = 11 : i64} {
  func.func @_blur_kernel(%arg0: i32, %arg1: memref<8x256xf32, #tpu.memory_space<vmem>>, %arg2: memref<8x256xf32, #tpu.memory_space<vmem>>) attributes {dimension_semantics = [#tpu.dimension_semantics<parallel>], iteration_bounds = array<i64: 1>, scalar_prefetch = 0 : i64, scratch_operands = 0 : i64, tpu.core_type = #tpu.core_type<tc>, window_params = [{transform_indices = @transform_0, window_bounds = array<i64: 8, 256>}, {transform_indices = @transform_1, window_bounds = array<i64: 8, 256>}]} {
    %c0 = arith.constant 0 : index
    %c0_0 = arith.constant 0 : index
    %0 = vector.load %arg1[%c0, %c0_0] : memref<8x256xf32, #tpu.memory_space<vmem>>, vector<8x256xf32>
    %1 = tpu.iota {dimensions = array<i32: 1>} : vector<1x256xi32>
    %c16_i32 = arith.constant 16 : i32
    %c0_i32 = arith.constant 0 : i32
    %2 = arith.cmpi eq, %c16_i32, %c0_i32 : i32
    %c1_i32 = arith.constant 1 : i32
    %3 = arith.select %2, %c1_i32, %c16_i32 : i32
    %4 = vector.broadcast %3 : i32 to vector<1x256xi32>
    %5 = arith.remsi %1, %4 : vector<1x256xi32>
    %c0_i32_1 = arith.constant 0 : i32
    %6 = vector.broadcast %c0_i32_1 : i32 to vector<1x256xi32>
    %7 = arith.cmpi ne, %5, %6 : vector<1x256xi32>
    %c0_i32_2 = arith.constant 0 : i32
    %8 = vector.broadcast %c0_i32_2 : i32 to vector<1x256xi32>
    %9 = arith.cmpi slt, %5, %8 : vector<1x256xi32>
    %c0_i32_3 = arith.constant 0 : i32
    %10 = arith.cmpi slt, %3, %c0_i32_3 : i32
    %11 = vector.broadcast %10 : i1 to vector<1x256xi1>
    %12 = vector.broadcast %11 : vector<1x256xi1> to vector<1x256xi1>
    %13 = arith.xori %9, %12 : vector<1x256xi1>
    %14 = arith.andi %13, %7 : vector<1x256xi1>
    %15 = vector.broadcast %3 : i32 to vector<1x256xi32>
    %16 = arith.addi %5, %15 : vector<1x256xi32>
    %17 = arith.select %14, %16, %5 : vector<1x256xi1>, vector<1x256xi32>
    %c16_i32_4 = arith.constant 16 : i32
    %18 = vector.broadcast %c16_i32_4 : i32 to vector<1x256xi32>
    %19 = arith.cmpi sge, %1, %18 : vector<1x256xi32>
    %20 = arith.extui %19 : vector<1x256xi1> to vector<1x256xi32>
    %21 = arith.sitofp %20 : vector<1x256xi32> to vector<1x256xf32>
    %c240_i32 = arith.constant 240 : i32
    %22 = vector.broadcast %c240_i32 : i32 to vector<1x256xi32>
    %23 = arith.cmpi slt, %1, %22 : vector<1x256xi32>
    %24 = arith.extui %23 : vector<1x256xi1> to vector<1x256xi32>
    %25 = arith.sitofp %24 : vector<1x256xi32> to vector<1x256xf32>
    %c0_i32_5 = arith.constant 0 : i32
    %26 = vector.broadcast %c0_i32_5 : i32 to vector<1x256xi32>
    %27 = arith.cmpi sgt, %17, %26 : vector<1x256xi32>
    %28 = arith.extui %27 : vector<1x256xi1> to vector<1x256xi32>
    %29 = arith.sitofp %28 : vector<1x256xi32> to vector<1x256xf32>
    %c15_i32 = arith.constant 15 : i32
    %30 = vector.broadcast %c15_i32 : i32 to vector<1x256xi32>
    %31 = arith.cmpi slt, %17, %30 : vector<1x256xi32>
    %32 = arith.extui %31 : vector<1x256xi1> to vector<1x256xi32>
    %33 = arith.sitofp %32 : vector<1x256xi32> to vector<1x256xf32>
    %c16_i32_6 = arith.constant 16 : i32
    %34 = tpu.dynamic_rotate %0 by %c16_i32_6 dim 1 : vector<8x256xf32>, i32 -> vector<8x256xf32>
    %35 = vector.broadcast %21 : vector<1x256xf32> to vector<8x256xf32>
    %36 = arith.mulf %34, %35 : vector<8x256xf32>
    %c240_i32_7 = arith.constant 240 : i32
    %37 = tpu.dynamic_rotate %0 by %c240_i32_7 dim 1 : vector<8x256xf32>, i32 -> vector<8x256xf32>
    %38 = vector.broadcast %25 : vector<1x256xf32> to vector<8x256xf32>
    %39 = arith.mulf %37, %38 : vector<8x256xf32>
    %40 = arith.addf %0, %0 : vector<8x256xf32>
    %41 = arith.addf %36, %40 : vector<8x256xf32>
    %42 = arith.addf %41, %39 : vector<8x256xf32>
    %c1_i32_8 = arith.constant 1 : i32
    %43 = tpu.dynamic_rotate %42 by %c1_i32_8 dim 1 : vector<8x256xf32>, i32 -> vector<8x256xf32>
    %44 = vector.broadcast %29 : vector<1x256xf32> to vector<8x256xf32>
    %45 = arith.mulf %43, %44 : vector<8x256xf32>
    %c255_i32 = arith.constant 255 : i32
    %46 = tpu.dynamic_rotate %42 by %c255_i32 dim 1 : vector<8x256xf32>, i32 -> vector<8x256xf32>
    %47 = vector.broadcast %33 : vector<1x256xf32> to vector<8x256xf32>
    %48 = arith.mulf %46, %47 : vector<8x256xf32>
    %49 = arith.addf %42, %42 : vector<8x256xf32>
    %50 = arith.addf %45, %49 : vector<8x256xf32>
    %51 = arith.addf %50, %48 : vector<8x256xf32>
    %cst = arith.constant 6.250000e-02 : f32
    %52 = vector.broadcast %cst : f32 to vector<8x256xf32>
    %53 = arith.mulf %51, %52 : vector<8x256xf32>
    %c0_9 = arith.constant 0 : index
    %c0_10 = arith.constant 0 : index
    %54 = vector.load %arg2[%c0_9, %c0_10] : memref<8x256xf32, #tpu.memory_space<vmem>>, vector<8x256xf32>
    tpu.vector_store %arg2[%c0_9, %c0_10], %53 {strides = array<i32>} : memref<8x256xf32, #tpu.memory_space<vmem>>, vector<8x256xf32>,
    return
  }
  func.func @transform_0(%arg0: i32) -> (i32, i32) {
    %c0_i32 = arith.constant 0 : i32
    %c0_i32_0 = arith.constant 0 : i32
    return %arg0, %c0_i32 : i32, i32
  }
  func.func @transform_1(%arg0: i32) -> (i32, i32) {
    %c0_i32 = arith.constant 0 : i32
    %c0_i32_0 = arith.constant 0 : i32
    return %arg0, %c0_i32 : i32, i32
  }
}

</mosaic_0001>

<llo_original>
// kernel: blur.1
$region0: #{blur.1}
  #allocation0 [shape = 'u32[]', space=smem, size = 0x4, offset = 0x4, fixed_abs, tag = 'smem constant byte address 0x4 - core index']
  #allocation1 [shape = 'u32[72,128]{1,0:T(1,128)}', space=vmem, size = 0x9000, scoped, tag = 'internal scratch']
  %s0 = inlined_call_operand.vmem [shape: f32[8,256], index: 0, kind: input, shape index: {}]
  %s1 = inlined_call_operand.vmem [shape: f32[8,256], index: 1, kind: output, shape index: {}]
  %s2 = sld [smem:[#allocation0]]
  $region14: #{blur.1} parent=0
    _
  %s4 = ssub.s32 1, %s2
  %s5 = scalar_select 0, %s4, %s2
  // Predicated region
  $region2: #{blur.1} parent=0 // pred_check
    _
  $region3: #{blur.1} parent=0 // pred_check_branch
    %7 = sbr.rel (0) target = $region5
  $region4: #{blur.1} parent=0 // pred_region
    _
  $region5: #{blur.1} parent=0 // pred_fallthru
    _
  %v8 = vld [vmem:[%s0] sm:$0xff]
  %v9 = vld [vmem:[%s0 + $0x8] sm:$0xff]
  %v10 = vlaneseq
  %v11 = vand.u32 %v10, 127
  %v12 = vadd.s32 %v11, 128
  %vm13 = vcmp.lt.s32.totalorder %v11, 0
  %v14 = vsub.s32 0, %v11
  %v15 = vsel %vm13, %v14, %v11
  %v16 = vshrl.u32 %v15, 4
  %v17 = vand.u32 %v15, 15
  %v18 = vsub.s32 0, %v17
  %v19 = vsel %vm13, %v18, %v17
  %vm20 = vcmp.lt.s32.totalorder %v12, 0
  %v21 = vsub.s32 0, %v12
  %v22 = vsel %vm20, %v21, %v12
  %v23 = vshrl.u32 %v22, 4
  %v24 = vand.u32 %v22, 15
  %v25 = vsub.s32 0, %v24
  %v26 = vsel %vm20, %v25, %v24
  %vm27 = vcmp.ne.s32.totalorder %v19, 0
  %vm28 = vcmp.ne.s32.totalorder %v26, 0
  %vm29 = vcmp.lt.s32.totalorder %v19, 0
  %vm30 = vcmp.lt.s32.totalorder %v26, 0
  %vm31 = vmand %vm29, %vm27
  %vm32 = vmand %vm30, %vm28
  %v33 = vadd.s32 %v19, 16
  %v34 = vadd.s32 %v26, 16
  %v35 = vsel %vm31, %v33, %v19
  %v36 = vsel %vm32, %v34, %v26
  %vm37 = vcmp.ge.s32.totalorder %v11, 16
  %vm38 = vcmp.ge.s32.totalorder %v12, 16
  %v39 = vsel %vm37, 1, 0
  %v40 = vsel %vm38, 1, 0
  %v41 = vcvt.s32.f32 %v39
  %v42 = vcvt.s32.f32 %v40
  %vm43 = vcmp.lt.s32.totalorder %v11, 240
  %vm44 = vcmp.lt.s32.totalorder %v12, 240
  %v45 = vsel %vm43, 1, 0
  %v46 = vsel %vm44, 1, 0
  %v47 = vcvt.s32.f32 %v45
  %v48 = vcvt.s32.f32 %v46
  %vm49 = vcmp.gt.s32.totalorder %v35, 0
  %vm50 = vcmp.gt.s32.totalorder %v36, 0
  %v51 = vsel %vm49, 1, 0
  %v52 = vsel %vm50, 1, 0
  %v53 = vcvt.s32.f32 %v51
  %v54 = vcvt.s32.f32 %v52
  %vm55 = vcmp.lt.s32.totalorder %v35, 15
  %vm56 = vcmp.lt.s32.totalorder %v36, 15
  %v57 = vsel %vm55, 1, 0
  %v58 = vsel %vm56, 1, 0
  %v59 = vcvt.s32.f32 %v57
  %v60 = vcvt.s32.f32 %v58
  %61 = vrot.lane.b32.xlu0 %v8, 16
  %v62 = vpop.permute.xlu0 %61
  %63 = vrot.lane.b32.xlu0 %v9, 16
  %v64 = vpop.permute.xlu0 %63
  %vm65 = vcmp.lt.s32.totalorder %v11, 16
  %v66 = vsel %vm65, %v62, %v64
  %v67 = vsel %vm65, %v64, %v62
  %v68 = vmul.f32 %v67, %v41
  %v69 = vmul.f32 %v66, %v42
  %70 = vrot.lane.b32.xlu0 %v8, 112
  %v71 = vpop.permute.xlu0 %70
  %72 = vrot.lane.b32.xlu0 %v9, 112
  %v73 = vpop.permute.xlu0 %72
  %vm74 = vcmp.lt.s32.totalorder %v11, 112
  %v75 = vsel %vm74, %v71, %v73
  %v76 = vsel %vm74, %v73, %v71
  %v77 = vmul.f32 %v75, %v47
  %v78 = vmul.f32 %v76, %v48
  %v79 = vadd.f32 %v8, %v8
  %v80 = vadd.f32 %v9, %v9
  %v81 = vadd.f32 %v68, %v79
  %v82 = vadd.f32 %v69, %v80
  %v83 = vadd.f32 %v81, %v77
  %v84 = vadd.f32 %v82, %v78
  %85 = vrot.lane.b32.xlu0 %v83, 1
  %v86 = vpop.permute.xlu0 %85
  %87 = vrot.lane.b32.xlu0 %v84, 1
  %v88 = vpop.permute.xlu0 %87
  %vm89 = vcmp.lt.s32.totalorder %v11, 1
  %v90 = vsel %vm89, %v86, %v88
  %v91 = vsel %vm89, %v88, %v86
  %v92 = vmul.f32 %v91, %v53
  %v93 = vmul.f32 %v90, %v54
  %94 = vrot.lane.b32.xlu0 %v83, 127
  %v95 = vpop.permute.xlu0 %94
  %96 = vrot.lane.b32.xlu0 %v84, 127
  %v97 = vpop.permute.xlu0 %96
  %vm98 = vcmp.lt.s32.totalorder %v11, 127
  %v99 = vsel %vm98, %v95, %v97
  %v100 = vsel %vm98, %v97, %v95
  %v101 = vmul.f32 %v99, %v59
  %v102 = vmul.f32 %v100, %v60
  %v103 = vadd.f32 %v83, %v83
  %v104 = vadd.f32 %v84, %v84
  %v105 = vadd.f32 %v92, %v103
  %v106 = vadd.f32 %v93, %v104
  %v107 = vadd.f32 %v105, %v101
  %v108 = vadd.f32 %v106, %v102
  %v109 = vmul.f32 %v107, 0.0625
  %v110 = vmul.f32 %v108, 0.0625
  %111 = vst [vmem:[%s1] sm:$0xff] %v109
  %112 = vst [vmem:[%s1 + $0x8] sm:$0xff] %v110
  // Predicated region
  $region6: #{blur.1} parent=0 // pred_check
    _
  $region7: #{blur.1} parent=0 // pred_check_branch
    %114 = sbr.rel (0) target = $region9
  $region8: #{blur.1} parent=0 // pred_region
    _
  $region9: #{blur.1} parent=0 // pred_fallthru
    _
  // Predicated region
  $region10: #{blur.1} parent=0 // pred_check
    _
  $region11: #{blur.1} parent=0 // pred_check_branch
    %116 = sbr.rel (0) target = $region13
  $region12: #{blur.1} parent=0 // pred_region
    _
  $region13: #{blur.1} parent=0 // pred_fallthru
    _

</llo_original>
